<compile_context>
chip_gen: v6e
topology: v6e:2x2x1
jax: 0.10.0
libtpu: 0.0.40
codegen_flags: <defaults>
</compile_context>

<pallas_src>
import math
import functools

import jax
import jax.numpy as jnp
from jax.experimental import pallas as pl
from jax.experimental.pallas import tpu as pltpu  # noqa: F401

# ----------------------------- configuration -------------------------------
MODEL_SIZE = 32
HEADS_NUM = 4
HEAD_DIM = MODEL_SIZE // HEADS_NUM
BATCH = 2
SEQ_LEN = 8


# ----------------------------- fused Pallas kernel --------------------------
def _mha_kernel(q_ref, k_ref, v_ref, m_ref, w_ref, b_ref, o_ref, *, heads_num):
    """Fused MHA: projections + all-heads attention + output projection.

    q_ref: (B, Sq, D)   k_ref/v_ref: (B, Sk, D)   m_ref: (B, Sq, Sk) float {0,1}
    w_ref: (D, 4D) bf16 = [Wq*scale | Wk | Wv | Wo]
    b_ref: (4, D) f32 rows = [bq*scale, bk, bv, bo]
    o_ref: (B, Sq, D)
    """
    B, Sq, D = q_ref.shape
    Sk = k_ref.shape[1]
    H = heads_num
    Dh = D // H

    # Row-flattened, bf16 activations for the MXU (f32 accumulation below).
    q2 = q_ref[...].reshape(B * Sq, D).astype(jnp.bfloat16)
    k2 = k_ref[...].reshape(B * Sk, D).astype(jnp.bfloat16)
    v2 = v_ref[...].reshape(B * Sk, D).astype(jnp.bfloat16)

    w = w_ref[...]            # (D, 4D) bf16, one lane-dense DMA
    b = b_ref[...]            # (4, D)  f32

    # Q/K/V projections (scale already folded into Wq / bq at init time).
    qp = jnp.dot(q2, w[:, 0 * D:1 * D], preferred_element_type=jnp.float32) + b[0:1, :]
    kp = jnp.dot(k2, w[:, 1 * D:2 * D], preferred_element_type=jnp.float32) + b[1:2, :]
    vp = jnp.dot(v2, w[:, 2 * D:3 * D], preferred_element_type=jnp.float32) + b[2:3, :]

    # Split heads: static lane slices, stacked head-major on the leading axis
    # (g = h*B + b).  Only leading-dim reshapes / concats, minor dim untouched.
    def to_heads(x, s):
        x3 = x.reshape(B, s, D)
        return jnp.concatenate(
            [x3[:, :, h * Dh:(h + 1) * Dh] for h in range(H)], axis=0)

    qg = to_heads(qp, Sq).astype(jnp.bfloat16)      # (H*B, Sq, Dh)
    kg = to_heads(kp, Sk).astype(jnp.bfloat16)      # (H*B, Sk, Dh)
    vg = to_heads(vp, Sk).astype(jnp.bfloat16)      # (H*B, Sk, Dh)

    # All-heads scores in one batched einsum.
    s = jnp.einsum("gqd,gkd->gqk", qg, kg,
                   preferred_element_type=jnp.float32)        # (H*B, Sq, Sk)

    # Additive mask computed ONCE, shared by all heads (head-major replication).
    neg = jnp.where(m_ref[...] == 0.0, -1.0e9, 0.0)           # (B, Sq, Sk) f32
    s = s + jnp.concatenate([neg] * H, axis=0)                # (H*B, Sq, Sk)

    # Single numerically-stable softmax over keys for every head at once (f32).
    mx = jnp.max(s, axis=-1, keepdims=True)
    e = jnp.exp(s - mx)
    denom = jnp.sum(e, axis=-1, keepdims=True)
    p = e * pl.reciprocal(denom, approx=True)                 # EUP slot

    # All-heads P @ V in one batched einsum.
    og = jnp.einsum("gqk,gkd->gqd", p.astype(jnp.bfloat16), vg,
                    preferred_element_type=jnp.float32)       # (H*B, Sq, Dh)

    # Combine heads back into lanes: static leading slices + one lane concat.
    attn = jnp.concatenate(
        [og[h * B:(h + 1) * B].reshape(B * Sq, Dh) for h in range(H)], axis=-1)

    # Output projection fused in the same kernel.
    y = jnp.dot(attn.astype(jnp.bfloat16), w[:, 3 * D:4 * D],
                preferred_element_type=jnp.float32) + b[3:4, :]
    o_ref[...] = y.reshape(B, Sq, D).astype(o_ref.dtype)


def multi_head_attention(params, queries, keys, values, mask):
    """queries: (B, Sq, D), keys/values: (B, Sk, D), mask: (B, Sq, Sk)."""
    B, Sq, D = queries.shape
    Sk = keys.shape[1]
    H = params["heads_num"]

    if mask.dtype != jnp.float32:
        mask = mask.astype(jnp.float32)

    kernel = functools.partial(_mha_kernel, heads_num=H)

    out = pl.pallas_call(
        kernel,
        out_shape=jax.ShapeDtypeStruct((B, Sq, D), jnp.float32),
        in_specs=[
            pl.BlockSpec((B, Sq, D), lambda: (0, 0, 0)),
            pl.BlockSpec((B, Sk, D), lambda: (0, 0, 0)),
            pl.BlockSpec((B, Sk, D), lambda: (0, 0, 0)),
            pl.BlockSpec((B, Sq, Sk), lambda: (0, 0, 0)),
            pl.BlockSpec((D, 4 * D), lambda: (0, 0)),
            pl.BlockSpec((4, D), lambda: (0, 0)),
        ],
        out_specs=pl.BlockSpec((B, Sq, D), lambda: (0, 0, 0)),
    )(queries, keys, values, mask, params["w_cat"], params["b_stack"])

    return out


# ----------------------------- pure-JAX reference ----------------------------
def reference_mha(params, queries, keys, values, mask):
    B, Sq, D = queries.shape
    H = params["heads_num"]
    Dh = D // H

    def split(x):
        return x.reshape(B, -1, H, Dh).transpose(0, 2, 1, 3)

    q = split(queries @ params["wq"] + params["bq"])
    k = split(keys @ params["wk"] + params["bk"])
    v = split(values @ params["wv"] + params["bv"])
    s = jnp.einsum("bhqd,bhkd->bhqk", q, k) / math.sqrt(Dh)
    s = jnp.where(mask[:, None, :, :] == 0, -1.0e9, s)
    p = jax.nn.softmax(s, axis=-1)
    o = jnp.einsum("bhqk,bhkd->bhqd", p, v)
    o = o.transpose(0, 2, 1, 3).reshape(B, Sq, D)
    return o @ params["wo"] + params["bo"]


# ----------------------------- parameter init -------------------------------
def init_mha_params(key, model_size, heads_num):
    ks = jax.random.split(key, 8)

    def lin(kw, kb):
        w = jax.random.normal(kw, (model_size, model_size), jnp.float32) * 0.05
        b = jax.random.normal(kb, (model_size,), jnp.float32) * 0.01
        return w, b

    wq, bq = lin(ks[0], ks[1])
    wk, bk = lin(ks[2], ks[3])
    wv, bv = lin(ks[4], ks[5])
    wo, bo = lin(ks[6], ks[7])

    # Kernel-side packed parameters (built ONCE, not per call):
    #   - 1/sqrt(head_dim) folded into Wq and bq,
    #   - weights concatenated into one lane-dense (D, 4D) bf16 slab,
    #   - biases stacked into a single (4, D) f32 operand.
    head_dim = model_size // heads_num
    scale = 1.0 / math.sqrt(head_dim)
    w_cat = jnp.concatenate([wq * scale, wk, wv, wo], axis=1).astype(jnp.bfloat16)
    b_stack = jnp.stack([bq * scale, bk, bv, bo], axis=0).astype(jnp.float32)

    return dict(wq=wq, bq=bq, wk=wk, bk=bk, wv=wv, bv=bv, wo=wo, bo=bo,
                w_cat=w_cat, b_stack=b_stack, heads_num=heads_num)


# ----------------------------- main -----------------------------------------
if __name__ == "__main__":
    key = jax.random.PRNGKey(0)
    kq, kk, kv, kp = jax.random.split(key, 4)

    queries = jax.random.normal(kq, (BATCH, SEQ_LEN, MODEL_SIZE), jnp.float32)
    keys = jax.random.normal(kk, (BATCH, SEQ_LEN, MODEL_SIZE), jnp.float32)
    values = jax.random.normal(kv, (BATCH, SEQ_LEN, MODEL_SIZE), jnp.float32)
    # causal mask broadcast over the batch (exercises masked_fill path);
    # built once here, not inside the per-call wrapper.
    mask = jnp.broadcast_to(
        jnp.tril(jnp.ones((SEQ_LEN, SEQ_LEN), jnp.float32)),
        (BATCH, SEQ_LEN, SEQ_LEN)).astype(jnp.float32)

    params = init_mha_params(kp, MODEL_SIZE, HEADS_NUM)

    out = multi_head_attention(params, queries, keys, values, mask)
    out = jax.block_until_ready(out)

    ref = reference_mha(params, queries, keys, values, mask)

    assert out.shape == (BATCH, SEQ_LEN, MODEL_SIZE)
    assert bool(jnp.all(jnp.isfinite(out)))
    # Tolerance loosened slightly vs pure-f32 because matmul operands run in
    # bf16 on the MXU (softmax math stays f32).
    assert bool(jnp.allclose(out, ref, atol=2e-2, rtol=2e-2))
    print("KERNEL_OK")
</pallas_src>

<mosaic_0001>
module attributes {stable_mosaic.version = 11 : i64} {
  func.func @_mha_kernel(%arg0: memref<2x8x32xf32, #tpu.memory_space<vmem>>, %arg1: memref<2x8x32xf32, #tpu.memory_space<vmem>>, %arg2: memref<2x8x32xf32, #tpu.memory_space<vmem>>, %arg3: memref<2x8x8xf32, #tpu.memory_space<vmem>>, %arg4: memref<32x128xbf16, #tpu.memory_space<vmem>>, %arg5: memref<4x32xf32, #tpu.memory_space<vmem>>, %arg6: memref<2x8x32xf32, #tpu.memory_space<vmem>>) attributes {dimension_semantics = [], scalar_prefetch = 0 : i64, scratch_operands = 0 : i64, tpu.core_type = #tpu.core_type<tc>} {
    %c0 = arith.constant 0 : index
    %c0_0 = arith.constant 0 : index
    %c0_1 = arith.constant 0 : index
    %0 = vector.load %arg0[%c0, %c0_0, %c0_1] : memref<2x8x32xf32, #tpu.memory_space<vmem>>, vector<2x8x32xf32>
    %1 = vector.shape_cast %0 : vector<2x8x32xf32> to vector<16x32xf32>
    %2 = arith.truncf %1 : vector<16x32xf32> to vector<16x32xbf16>
    %c0_2 = arith.constant 0 : index
    %c0_3 = arith.constant 0 : index
    %c0_4 = arith.constant 0 : index
    %3 = vector.load %arg1[%c0_2, %c0_3, %c0_4] : memref<2x8x32xf32, #tpu.memory_space<vmem>>, vector<2x8x32xf32>
    %4 = vector.shape_cast %3 : vector<2x8x32xf32> to vector<16x32xf32>
    %5 = arith.truncf %4 : vector<16x32xf32> to vector<16x32xbf16>
    %c0_5 = arith.constant 0 : index
    %c0_6 = arith.constant 0 : index
    %c0_7 = arith.constant 0 : index
    %6 = vector.load %arg2[%c0_5, %c0_6, %c0_7] : memref<2x8x32xf32, #tpu.memory_space<vmem>>, vector<2x8x32xf32>
    %7 = vector.shape_cast %6 : vector<2x8x32xf32> to vector<16x32xf32>
    %8 = arith.truncf %7 : vector<16x32xf32> to vector<16x32xbf16>
    %c0_8 = arith.constant 0 : index
    %c0_9 = arith.constant 0 : index
    %9 = vector.load %arg4[%c0_8, %c0_9] : memref<32x128xbf16, #tpu.memory_space<vmem>>, vector<32x128xbf16>
    %c0_10 = arith.constant 0 : index
    %c0_11 = arith.constant 0 : index
    %10 = vector.load %arg5[%c0_10, %c0_11] : memref<4x32xf32, #tpu.memory_space<vmem>>, vector<4x32xf32>
    %11 = vector.extract_strided_slice %9 {offsets = [0, 0], sizes = [32, 32], strides = [1, 1]} : vector<32x128xbf16> to vector<32x32xbf16>
    %cst = arith.constant dense<0.000000e+00> : vector<16x32xf32>
    %12 = tpu.matmul %2, %11, %cst {dimension_numbers = #tpu.dot_dimension_numbers<[1], [0], [0], [1], [0, 0, 1, 1], [], []>} : vector<16x32xbf16>, vector<32x32xbf16>, vector<16x32xf32> -> vector<16x32xf32>
    %13 = vector.extract_strided_slice %10 {offsets = [0, 0], sizes = [1, 32], strides = [1, 1]} : vector<4x32xf32> to vector<1x32xf32>
    %14 = vector.broadcast %13 : vector<1x32xf32> to vector<16x32xf32>
    %15 = arith.addf %12, %14 : vector<16x32xf32>
    %16 = vector.extract_strided_slice %9 {offsets = [0, 32], sizes = [32, 32], strides = [1, 1]} : vector<32x128xbf16> to vector<32x32xbf16>
    %cst_12 = arith.constant dense<0.000000e+00> : vector<16x32xf32>
    %17 = tpu.matmul %5, %16, %cst_12 {dimension_numbers = #tpu.dot_dimension_numbers<[1], [0], [0], [1], [0, 0, 1, 1], [], []>} : vector<16x32xbf16>, vector<32x32xbf16>, vector<16x32xf32> -> vector<16x32xf32>
    %18 = vector.extract_strided_slice %10 {offsets = [1, 0], sizes = [1, 32], strides = [1, 1]} : vector<4x32xf32> to vector<1x32xf32>
    %19 = vector.broadcast %18 : vector<1x32xf32> to vector<16x32xf32>
    %20 = arith.addf %17, %19 : vector<16x32xf32>
    %21 = vector.extract_strided_slice %9 {offsets = [0, 64], sizes = [32, 32], strides = [1, 1]} : vector<32x128xbf16> to vector<32x32xbf16>
    %cst_13 = arith.constant dense<0.000000e+00> : vector<16x32xf32>
    %22 = tpu.matmul %8, %21, %cst_13 {dimension_numbers = #tpu.dot_dimension_numbers<[1], [0], [0], [1], [0, 0, 1, 1], [], []>} : vector<16x32xbf16>, vector<32x32xbf16>, vector<16x32xf32> -> vector<16x32xf32>
    %23 = vector.extract_strided_slice %10 {offsets = [2, 0], sizes = [1, 32], strides = [1, 1]} : vector<4x32xf32> to vector<1x32xf32>
    %24 = vector.broadcast %23 : vector<1x32xf32> to vector<16x32xf32>
    %25 = arith.addf %22, %24 : vector<16x32xf32>
    %26 = vector.shape_cast %15 : vector<16x32xf32> to vector<2x8x32xf32>
    %27 = vector.extract_strided_slice %26 {offsets = [0, 0, 0], sizes = [2, 8, 8], strides = [1, 1, 1]} : vector<2x8x32xf32> to vector<2x8x8xf32>
    %28 = vector.extract_strided_slice %26 {offsets = [0, 0, 8], sizes = [2, 8, 8], strides = [1, 1, 1]} : vector<2x8x32xf32> to vector<2x8x8xf32>
    %29 = vector.extract_strided_slice %26 {offsets = [0, 0, 16], sizes = [2, 8, 8], strides = [1, 1, 1]} : vector<2x8x32xf32> to vector<2x8x8xf32>
    %30 = vector.extract_strided_slice %26 {offsets = [0, 0, 24], sizes = [2, 8, 8], strides = [1, 1, 1]} : vector<2x8x32xf32> to vector<2x8x8xf32>
    %31 = tpu.concatenate %27, %28, %29, %30 in 0 : vector<2x8x8xf32>, vector<2x8x8xf32>, vector<2x8x8xf32>, vector<2x8x8xf32> -> vector<8x8x8xf32>
    %32 = arith.truncf %31 : vector<8x8x8xf32> to vector<8x8x8xbf16>
    %33 = vector.shape_cast %20 : vector<16x32xf32> to vector<2x8x32xf32>
    %34 = vector.extract_strided_slice %33 {offsets = [0, 0, 0], sizes = [2, 8, 8], strides = [1, 1, 1]} : vector<2x8x32xf32> to vector<2x8x8xf32>
    %35 = vector.extract_strided_slice %33 {offsets = [0, 0, 8], sizes = [2, 8, 8], strides = [1, 1, 1]} : vector<2x8x32xf32> to vector<2x8x8xf32>
    %36 = vector.extract_strided_slice %33 {offsets = [0, 0, 16], sizes = [2, 8, 8], strides = [1, 1, 1]} : vector<2x8x32xf32> to vector<2x8x8xf32>
    %37 = vector.extract_strided_slice %33 {offsets = [0, 0, 24], sizes = [2, 8, 8], strides = [1, 1, 1]} : vector<2x8x32xf32> to vector<2x8x8xf32>
    %38 = tpu.concatenate %34, %35, %36, %37 in 0 : vector<2x8x8xf32>, vector<2x8x8xf32>, vector<2x8x8xf32>, vector<2x8x8xf32> -> vector<8x8x8xf32>
    %39 = arith.truncf %38 : vector<8x8x8xf32> to vector<8x8x8xbf16>
    %40 = vector.shape_cast %25 : vector<16x32xf32> to vector<2x8x32xf32>
    %41 = vector.extract_strided_slice %40 {offsets = [0, 0, 0], sizes = [2, 8, 8], strides = [1, 1, 1]} : vector<2x8x32xf32> to vector<2x8x8xf32>
    %42 = vector.extract_strided_slice %40 {offsets = [0, 0, 8], sizes = [2, 8, 8], strides = [1, 1, 1]} : vector<2x8x32xf32> to vector<2x8x8xf32>
    %43 = vector.extract_strided_slice %40 {offsets = [0, 0, 16], sizes = [2, 8, 8], strides = [1, 1, 1]} : vector<2x8x32xf32> to vector<2x8x8xf32>
    %44 = vector.extract_strided_slice %40 {offsets = [0, 0, 24], sizes = [2, 8, 8], strides = [1, 1, 1]} : vector<2x8x32xf32> to vector<2x8x8xf32>
    %45 = tpu.concatenate %41, %42, %43, %44 in 0 : vector<2x8x8xf32>, vector<2x8x8xf32>, vector<2x8x8xf32>, vector<2x8x8xf32> -> vector<8x8x8xf32>
    %46 = arith.truncf %45 : vector<8x8x8xf32> to vector<8x8x8xbf16>
    "tpu.trace_start"() <{level = 10 : i32, message = "gqd,gkd->gqk"}> : () -> ()
    %cst_14 = arith.constant dense<0.000000e+00> : vector<8x8x8xf32>
    %47 = tpu.matmul %32, %39, %cst_14 {dimension_numbers = #tpu.dot_dimension_numbers<[2], [2], [1], [1], [0, 0, 0, 1, 1, 1], [0], [0]>} : vector<8x8x8xbf16>, vector<8x8x8xbf16>, vector<8x8x8xf32> -> vector<8x8x8xf32>
    "tpu.trace_stop"() : () -> ()
    %c0_15 = arith.constant 0 : index
    %c0_16 = arith.constant 0 : index
    %c0_17 = arith.constant 0 : index
    %48 = vector.load %arg3[%c0_15, %c0_16, %c0_17] : memref<2x8x8xf32, #tpu.memory_space<vmem>>, vector<2x8x8xf32>
    %cst_18 = arith.constant 0.000000e+00 : f32
    %49 = vector.broadcast %cst_18 : f32 to vector<2x8x8xf32>
    %50 = arith.cmpf oeq, %48, %49 : vector<2x8x8xf32>
    %cst_19 = arith.constant -1.000000e+09 : f32
    %cst_20 = arith.constant 0.000000e+00 : f32
    %51 = vector.broadcast %cst_19 : f32 to vector<2x8x8xf32>
    %52 = vector.broadcast %cst_20 : f32 to vector<2x8x8xf32>
    %53 = arith.select %50, %51, %52 : vector<2x8x8xi1>, vector<2x8x8xf32>
    %54 = tpu.concatenate %53, %53, %53, %53 in 0 : vector<2x8x8xf32>, vector<2x8x8xf32>, vector<2x8x8xf32>, vector<2x8x8xf32> -> vector<8x8x8xf32>
    %55 = arith.addf %47, %54 : vector<8x8x8xf32>
    %cst_21 = arith.constant dense<0xFF800000> : vector<8x8xf32>
    %56 = vector.multi_reduction <maximumf>, %55, %cst_21 [2] : vector<8x8x8xf32> to vector<8x8xf32>
    %57 = vector.shape_cast %56 : vector<8x8xf32> to vector<8x8x1xf32>
    %58 = vector.broadcast %57 : vector<8x8x1xf32> to vector<8x8x8xf32>
    %59 = arith.subf %55, %58 : vector<8x8x8xf32>
    %60 = math.exp %59 : vector<8x8x8xf32>
    %cst_22 = arith.constant dense<0.000000e+00> : vector<8x8xf32>
    %61 = vector.multi_reduction <add>, %60, %cst_22 [2] : vector<8x8x8xf32> to vector<8x8xf32>
    %62 = vector.shape_cast %61 : vector<8x8xf32> to vector<8x8x1xf32>
    %63 = tpu.reciprocal %62 {approx = true} : vector<8x8x1xf32> -> vector<8x8x1xf32>
    %64 = vector.broadcast %63 : vector<8x8x1xf32> to vector<8x8x8xf32>
    %65 = arith.mulf %60, %64 : vector<8x8x8xf32>
    %66 = arith.truncf %65 : vector<8x8x8xf32> to vector<8x8x8xbf16>
    "tpu.trace_start"() <{level = 10 : i32, message = "gqk,gkd->gqd"}> : () -> ()
    %cst_23 = arith.constant dense<0.000000e+00> : vector<8x8x8xf32>
    %67 = tpu.matmul %66, %46, %cst_23 {dimension_numbers = #tpu.dot_dimension_numbers<[2], [1], [1], [2], [0, 0, 0, 1, 1, 2], [0], [0]>} : vector<8x8x8xbf16>, vector<8x8x8xbf16>, vector<8x8x8xf32> -> vector<8x8x8xf32>
    "tpu.trace_stop"() : () -> ()
    %68 = vector.extract_strided_slice %67 {offsets = [0, 0, 0], sizes = [2, 8, 8], strides = [1, 1, 1]} : vector<8x8x8xf32> to vector<2x8x8xf32>
    %69 = vector.shape_cast %68 : vector<2x8x8xf32> to vector<16x8xf32>
    %70 = vector.extract_strided_slice %67 {offsets = [2, 0, 0], sizes = [2, 8, 8], strides = [1, 1, 1]} : vector<8x8x8xf32> to vector<2x8x8xf32>
    %71 = vector.shape_cast %70 : vector<2x8x8xf32> to vector<16x8xf32>
    %72 = vector.extract_strided_slice %67 {offsets = [4, 0, 0], sizes = [2, 8, 8], strides = [1, 1, 1]} : vector<8x8x8xf32> to vector<2x8x8xf32>
    %73 = vector.shape_cast %72 : vector<2x8x8xf32> to vector<16x8xf32>
    %74 = vector.extract_strided_slice %67 {offsets = [6, 0, 0], sizes = [2, 8, 8], strides = [1, 1, 1]} : vector<8x8x8xf32> to vector<2x8x8xf32>
    %75 = vector.shape_cast %74 : vector<2x8x8xf32> to vector<16x8xf32>
    %76 = tpu.concatenate %69, %71, %73, %75 in 1 : vector<16x8xf32>, vector<16x8xf32>, vector<16x8xf32>, vector<16x8xf32> -> vector<16x32xf32>
    %77 = arith.truncf %76 : vector<16x32xf32> to vector<16x32xbf16>
    %78 = vector.extract_strided_slice %9 {offsets = [0, 96], sizes = [32, 32], strides = [1, 1]} : vector<32x128xbf16> to vector<32x32xbf16>
    %cst_24 = arith.constant dense<0.000000e+00> : vector<16x32xf32>
    %79 = tpu.matmul %77, %78, %cst_24 {dimension_numbers = #tpu.dot_dimension_numbers<[1], [0], [0], [1], [0, 0, 1, 1], [], []>} : vector<16x32xbf16>, vector<32x32xbf16>, vector<16x32xf32> -> vector<16x32xf32>
    %80 = vector.extract_strided_slice %10 {offsets = [3, 0], sizes = [1, 32], strides = [1, 1]} : vector<4x32xf32> to vector<1x32xf32>
    %81 = vector.broadcast %80 : vector<1x32xf32> to vector<16x32xf32>
    %82 = arith.addf %79, %81 : vector<16x32xf32>
    %83 = vector.shape_cast %82 : vector<16x32xf32> to vector<2x8x32xf32>
    %c0_25 = arith.constant 0 : index
    %c0_26 = arith.constant 0 : index
    %c0_27 = arith.constant 0 : index
    %84 = vector.load %arg6[%c0_25, %c0_26, %c0_27] : memref<2x8x32xf32, #tpu.memory_space<vmem>>, vector<2x8x32xf32>
    tpu.vector_store %arg6[%c0_25, %c0_26, %c0_27], %83 {strides = array<i32>} : memref<2x8x32xf32, #tpu.memory_space<vmem>>, vector<2x8x32xf32>,
    return
  }
}

</mosaic_0001>

<llo_original>
// kernel: tpu_custom_call.1
$region0: #{tpu_custom_call.1}
  #allocation0 [shape = 'u32[]', space=smem, size = 0x4, offset = 0x4, fixed_abs, tag = 'smem constant byte address 0x4 - core index']
  #allocation1 [shape = 'u32[144,128]{1,0:T(1,128)}', space=vmem, size = 0x12000, scoped, tag = 'internal scratch']
  %s0 = inlined_call_operand.hbm [shape: f32[2,8,32], index: 0, kind: input, shape index: {}]
  %s1 = inlined_call_operand.hbm [shape: f32[2,8,32], index: 1, kind: input, shape index: {}]
  %s2 = inlined_call_operand.hbm [shape: f32[2,8,32], index: 2, kind: input, shape index: {}]
  %s3 = inlined_call_operand.hbm [shape: f32[2,8,8], index: 3, kind: input, shape index: {}]
  %s4 = inlined_call_operand.hbm [shape: bf16[32,128], index: 4, kind: input, shape index: {}]
  %s5 = inlined_call_operand.vmem [shape: f32[4,32], index: 5, kind: input, shape index: {}]
  %s6 = inlined_call_operand.hbm [shape: f32[2,8,32], index: 6, kind: output, shape index: {}]
  %s7 = sld [smem:[#allocation0]]
  $region54: #{tpu_custom_call.1} parent=0
    _
  %s9 = ssub.s32 1, %s7
  %s10 = scalar_select 0, %s9, %s7
  $region1: #{tpu_custom_call.1} parent=0
    #allocation2 [shape = 'u8[8192]{0}', space=vmem, size = 0x2000, scoped, tag = 'input window, operand 0, single buffered']
    #allocation3 [shape = 's32[1]{0}', space=sflag, size = 0x4, scoped, tag = 'scoped memory for tpu_custom_call.1']
    #allocation4 [shape = 's32[1]{0}', space=sflag, size = 0x4, scoped, tag = 'scoped memory for tpu_custom_call.1']
    #allocation5 [shape = 'u8[8192]{0}', space=vmem, size = 0x2000, scoped, tag = 'input window, operand 1, single buffered']
    #allocation6 [shape = 's32[1]{0}', space=sflag, size = 0x4, scoped, tag = 'scoped memory for tpu_custom_call.1']
    #allocation7 [shape = 'u8[8192]{0}', space=vmem, size = 0x2000, scoped, tag = 'input window, operand 2, single buffered']
    #allocation8 [shape = 'u8[8192]{0}', space=vmem, size = 0x2000, scoped, tag = 'input window, operand 3, single buffered']
    #allocation9 [shape = 's32[1]{0}', space=sflag, size = 0x4, scoped, tag = 'scoped memory for tpu_custom_call.1']
    #allocation10 [shape = 'u8[8192]{0}', space=vmem, size = 0x2000, scoped, tag = 'input window, operand 4, single buffered']
    #allocation11 [shape = 'u8[8192]{0}', space=vmem, size = 0x2000, scoped, tag = 'output window, operand 0, single buffered']
    %11 = vsyncpa [#allocation3], 0
    %12 = vsyncpa [#allocation6], 0
    %13 = vsyncpa [#allocation9], 0
    %14 = vsyncpa [#allocation4], 0
    // Predicated region
    $region2: #{tpu_custom_call.1} parent=1 // pred_check
      _
    $region3: #{tpu_custom_call.1} parent=1 // pred_check_branch
      %16 = sbr.rel (0) target = $region5
    $region4: #{tpu_custom_call.1} parent=1 // pred_region
      %s18 = ssub.s32 256, 256
      %19 = vsyncadd [#allocation3], %s18
      %s20 = sshll.u32 [#allocation2], 4
      %s21 = int_to_ptr.vmem [resolvable:$true] %s20
      %26 = dma.hbm_to_vmem [thread:$0]  %s0, 256, %s21, [#allocation3], 128, 128, 8
    $region5: #{tpu_custom_call.1} parent=1 // pred_fallthru
      _
    // Predicated region
    $region6: #{tpu_custom_call.1} parent=1 // pred_check
      _
    $region7: #{tpu_custom_call.1} parent=1 // pred_check_branch
      %28 = sbr.rel (0) target = $region9
    $region8: #{tpu_custom_call.1} parent=1 // pred_region
      %s30 = ssub.s32 256, 256
      %31 = vsyncadd [#allocation6], %s30
      %s32 = sshll.u32 [#allocation5], 4
      %s33 = int_to_ptr.vmem [resolvable:$true] %s32
      %38 = dma.hbm_to_vmem [thread:$0]  %s1, 256, %s33, [#allocation6], 128, 128, 8
    $region9: #{tpu_custom_call.1} parent=1 // pred_fallthru
      _
    // Predicated region
    $region10: #{tpu_custom_call.1} parent=1 // pred_check
      _
    $region11: #{tpu_custom_call.1} parent=1 // pred_check_branch
      %40 = sbr.rel (0) target = $region13
    $region12: #{tpu_custom_call.1} parent=1 // pred_region
      %s42 = ssub.s32 256, 256
      %43 = vsyncadd [#allocation6], %s42
      %s44 = sshll.u32 [#allocation7], 4
      %s45 = int_to_ptr.vmem [resolvable:$true] %s44
      %50 = dma.hbm_to_vmem [thread:$0]  %s2, 256, %s45, [#allocation6], 128, 128, 8
    $region13: #{tpu_custom_call.1} parent=1 // pred_fallthru
      _
    // Predicated region
    $region14: #{tpu_custom_call.1} parent=1 // pred_check
      _
    $region15: #{tpu_custom_call.1} parent=1 // pred_check_branch
      %52 = sbr.rel (0) target = $region17
    $region16: #{tpu_custom_call.1} parent=1 // pred_region
      %s54 = ssub.s32 256, 256
      %55 = vsyncadd [#allocation9], %s54
      %s56 = sshll.u32 [#allocation8], 4
      %s57 = int_to_ptr.vmem [resolvable:$true] %s56
      %62 = dma.hbm_to_vmem [thread:$0]  %s3, 256, %s57, [#allocation9], 128, 128, 8
    $region17: #{tpu_custom_call.1} parent=1 // pred_fallthru
      _
    // Predicated region
    $region18: #{tpu_custom_call.1} parent=1 // pred_check
      _
    $region19: #{tpu_custom_call.1} parent=1 // pred_check_branch
      %64 = sbr.rel (0) target = $region21
    $region20: #{tpu_custom_call.1} parent=1 // pred_region
      %s66 = ssub.s32 256, 256
      %67 = vsyncadd [#allocation9], %s66
      %s68 = sshll.u32 [#allocation10], 4
      %s69 = int_to_ptr.vmem [resolvable:$true] %s68
      %74 = dma.hbm_to_vmem [thread:$0]  %s4, 256, %s69, [#allocation9], 64, 64, 4
    $region21: #{tpu_custom_call.1} parent=1 // pred_fallthru
      _
    // Predicated region
    $region22: #{tpu_custom_call.1} parent=1 // pred_check
      _
    $region23: #{tpu_custom_call.1} parent=1 // pred_check_branch
      %76 = sbr.rel (0) target = $region25
    $region24: #{tpu_custom_call.1} parent=1 // pred_region
      _
    $region25: #{tpu_custom_call.1} parent=1 // pred_fallthru
      _
    // Predicated region
    $region26: #{tpu_custom_call.1} parent=1 // pred_check
      _
    $region27: #{tpu_custom_call.1} parent=1 // pred_check_branch
      %78 = sbr.rel (0) target = $region29
    $region28: #{tpu_custom_call.1} parent=1 // pred_region
      %79 = dma.done [#allocation3], 256
    $region29: #{tpu_custom_call.1} parent=1 // pred_fallthru
      _
    // Predicated region
    $region30: #{tpu_custom_call.1} parent=1 // pred_check
      _
    $region31: #{tpu_custom_call.1} parent=1 // pred_check_branch
      %81 = sbr.rel (0) target = $region33
    $region32: #{tpu_custom_call.1} parent=1 // pred_region
      %82 = dma.done [#allocation6], 256
    $region33: #{tpu_custom_call.1} parent=1 // pred_fallthru
      _
    // Predicated region
    $region34: #{tpu_custom_call.1} parent=1 // pred_check
      _
    $region35: #{tpu_custom_call.1} parent=1 // pred_check_branch
      %84 = sbr.rel (0) target = $region37
    $region36: #{tpu_custom_call.1} parent=1 // pred_region
      %85 = dma.done [#allocation6], 256
    $region37: #{tpu_custom_call.1} parent=1 // pred_fallthru
      _
    // Predicated region
    $region38: #{tpu_custom_call.1} parent=1 // pred_check
      _
    $region39: #{tpu_custom_call.1} parent=1 // pred_check_branch
      %87 = sbr.rel (0) target = $region41
    $region40: #{tpu_custom_call.1} parent=1 // pred_region
      %88 = dma.done [#allocation9], 256
    $region41: #{tpu_custom_call.1} parent=1 // pred_fallthru
      _
    // Predicated region
    $region42: #{tpu_custom_call.1} parent=1 // pred_check
      _
    $region43: #{tpu_custom_call.1} parent=1 // pred_check_branch
      %90 = sbr.rel (0) target = $region45
    $region44: #{tpu_custom_call.1} parent=1 // pred_region
      %91 = dma.done [#allocation9], 256
    $region45: #{tpu_custom_call.1} parent=1 // pred_fallthru
      _
    %v93 = vld [vmem:[#allocation2] sm:$0xff]
    %v94 = vld [vmem:[#allocation2 + $0x8] sm:$0xff]
    %v95 = vpack.c.bf16 %v94, %v93
    %v96 = vld [vmem:[#allocation5] sm:$0xff]
    %v97 = vld [vmem:[#allocation5 + $0x8] sm:$0xff]
    %v98 = vpack.c.bf16 %v97, %v96
    %v99 = vld [vmem:[#allocation7] sm:$0xff]
    %v100 = vld [vmem:[#allocation7 + $0x8] sm:$0xff]
    %v101 = vpack.c.bf16 %v100, %v99
    %v102 = vld [vmem:[#allocation10] sm:$0xf]
    %v103 = vld [vmem:[#allocation10 + $0x4] sm:$0xf]
    %v104 = vld [vmem:[#allocation10 + $0x8] sm:$0xf]
    %v105 = vld [vmem:[#allocation10 + $0xc] sm:$0xf]
    %v106 = vld [vmem:[%s5] sm:$0xf]
    %v107 = vlaneseq
    %v108 = vshrl.u32 %v107, 7
    %v109 = vsub.s32 0, %v108
    %v110 = vrot.slane %v106, %v109
    %v115 = vunpack.c.l.b16 %v102
    %v116 = vunpack.c.l.b16 %v103
    %v117 = vunpack.c.l.b16 %v104
    %v118 = vunpack.c.l.b16 %v105
    %v119 = vpack.c.b16 %v116, %v115
    %v120 = vpack.c.b16 %v118, %v117
    %vm123 = vcmask 261120
    %v125 = vsel %vm123, %v95, 0
    %127 = vmatprep.subr.bf16.mxu0 0
    %128 = vmatpush1.bf16.msra.mxu0 0
    %129 = vmatprep.subr.bf16.mxu0 0
    %130 = vmatpush1.bf16.msra.mxu0 0
    %131 = vmatprep.subr.bf16.mxu0 0
    %132 = vmatpush1.bf16.msra.mxu0 0
    %133 = vmatprep.subr.bf16.mxu0 0
    %134 = vmatpush1.bf16.msra.mxu0 0
    %135 = vmatprep.subr.bf16.mxu0 0
    %136 = vmatpush1.bf16.msra.mxu0 0
    %137 = vmatprep.subr.bf16.mxu0 0
    %138 = vmatpush1.bf16.msra.mxu0 0
    %139 = vmatprep.subr.bf16.mxu0 0
    %140 = vmatpush1.bf16.msra.mxu0 %v120
    %141 = vmatprep.subr.bf16.mxu0 0
    %142 = vmatpush1.bf16.msra.mxu0 %v119
    %143 = vmatprep.subr.bf16.mxu0 0
    %144 = vmatpush2.bf16.msra.mxu0 0
    %145 = vmatprep.subr.bf16.mxu0 0
    %146 = vmatpush2.bf16.msra.mxu0 0
    %147 = vmatprep.subr.bf16.mxu0 0
    %148 = vmatpush2.bf16.msra.mxu0 0
    %149 = vmatprep.subr.bf16.mxu0 0
    %150 = vmatpush2.bf16.msra.mxu0 0
    %151 = vmatprep.subr.bf16.mxu0 0
    %152 = vmatpush2.bf16.msra.mxu0 0
    %153 = vmatprep.subr.bf16.mxu0 0
    %154 = vmatpush2.bf16.msra.mxu0 0
    %155 = vmatprep.subr.bf16.mxu0 0
    %156 = vmatpush2.bf16.msra.mxu0 0
    %157 = vmatprep.subr.bf16.mxu0 0
    %158 = vmatpush2.bf16.msra.mxu0 0
    %159 = vmatprep.mubr.bf16.mxu0 0
    %160 = vmatmul.mubr.bf16.gmra.mxu0 %v125
    %v161 = vpop.f32.mrf.mxu0
    %v162 = vadd.f32 %v110, %v161
    %v163 = vpop.f32.mrf.mxu0
    %v164 = vpop.f32.mrf.mxu0
    %v165 = vadd.f32 %v110, %v164
    %v166 = vpop.f32.mrf.mxu0
    %167 = vdwg.mxu0
    %v168 = vlaneseq
    %v169 = vshrl.u32 %v168, 7
    %v170 = vsub.s32 1, %v169
    %v171 = vrot.slane %v106, %v170
    %172 = vrot.lane.b32.xlu0 %v119, 96
    %v173 = vpop.permute.xlu0 %172
    %174 = vrot.lane.b32.xlu0 %v120, 96
    %v175 = vpop.permute.xlu0 %174
    %v179 = vsel %vm123, %v98, 0
    %181 = vmatprep.subr.bf16.mxu0 0
    %182 = vmatpush1.bf16.msra.mxu0 0
    %183 = vmatprep.subr.bf16.mxu0 0
    %184 = vmatpush1.bf16.msra.mxu0 0
    %185 = vmatprep.subr.bf16.mxu0 0
    %186 = vmatpush1.bf16.msra.mxu0 0
    %187 = vmatprep.subr.bf16.mxu0 0
    %188 = vmatpush1.bf16.msra.mxu0 0
    %189 = vmatprep.subr.bf16.mxu0 0
    %190 = vmatpush1.bf16.msra.mxu0 0
    %191 = vmatprep.subr.bf16.mxu0 0
    %192 = vmatpush1.bf16.msra.mxu0 0
    %193 = vmatprep.subr.bf16.mxu0 0
    %194 = vmatpush1.bf16.msra.mxu0 %v175
    %195 = vmatprep.subr.bf16.mxu0 0
    %196 = vmatpush1.bf16.msra.mxu0 %v173
    %197 = vmatprep.subr.bf16.mxu0 0
    %198 = vmatpush2.bf16.msra.mxu0 0
    %199 = vmatprep.subr.bf16.mxu0 0
    %200 = vmatpush2.bf16.msra.mxu0 0
    %201 = vmatprep.subr.bf16.mxu0 0
    %202 = vmatpush2.bf16.msra.mxu0 0
    %203 = vmatprep.subr.bf16.mxu0 0
    %204 = vmatpush2.bf16.msra.mxu0 0
    %205 = vmatprep.subr.bf16.mxu0 0
    %206 = vmatpush2.bf16.msra.mxu0 0
    %207 = vmatprep.subr.bf16.mxu0 0
    %208 = vmatpush2.bf16.msra.mxu0 0
    %209 = vmatprep.subr.bf16.mxu0 0
    %210 = vmatpush2.bf16.msra.mxu0 0
    %211 = vmatprep.subr.bf16.mxu0 0
    %212 = vmatpush2.bf16.msra.mxu0 0
    %213 = vmatprep.mubr.bf16.mxu0 0
    %214 = vmatmul.mubr.bf16.gmra.mxu0 %v179
    %v215 = vpop.f32.mrf.mxu0
    %v216 = vadd.f32 %v171, %v215
    %v217 = vpop.f32.mrf.mxu0
    %v218 = vpop.f32.mrf.mxu0
    %v219 = vadd.f32 %v171, %v218
    %v220 = vpop.f32.mrf.mxu0
    %221 = vdwg.mxu0
    %v222 = vlaneseq
    %v223 = vshrl.u32 %v222, 7
    %v224 = vsub.s32 2, %v223
    %v225 = vrot.slane %v106, %v224
    %226 = vrot.lane.b32.xlu0 %v119, 64
    %v227 = vpop.permute.xlu0 %226
    %228 = vrot.lane.b32.xlu0 %v120, 64
    %v229 = vpop.permute.xlu0 %228
    %v233 = vsel %vm123, %v101, 0
    %235 = vmatprep.subr.bf16.mxu0 0
    %236 = vmatpush1.bf16.msra.mxu0 0
    %237 = vmatprep.subr.bf16.mxu0 0
    %238 = vmatpush1.bf16.msra.mxu0 0
    %239 = vmatprep.subr.bf16.mxu0 0
    %240 = vmatpush1.bf16.msra.mxu0 0
    %241 = vmatprep.subr.bf16.mxu0 0
    %242 = vmatpush1.bf16.msra.mxu0 0
    %243 = vmatprep.subr.bf16.mxu0 0
    %244 = vmatpush1.bf16.msra.mxu0 0
    %245 = vmatprep.subr.bf16.mxu0 0
    %246 = vmatpush1.bf16.msra.mxu0 0
    %247 = vmatprep.subr.bf16.mxu0 0
    %248 = vmatpush1.bf16.msra.mxu0 %v229
    %249 = vmatprep.subr.bf16.mxu0 0
    %250 = vmatpush1.bf16.msra.mxu0 %v227
    %251 = vmatprep.subr.bf16.mxu0 0
    %252 = vmatpush2.bf16.msra.mxu0 0
    %253 = vmatprep.subr.bf16.mxu0 0
    %254 = vmatpush2.bf16.msra.mxu0 0
    %255 = vmatprep.subr.bf16.mxu0 0
    %256 = vmatpush2.bf16.msra.mxu0 0
    %257 = vmatprep.subr.bf16.mxu0 0
    %258 = vmatpush2.bf16.msra.mxu0 0
    %259 = vmatprep.subr.bf16.mxu0 0
    %260 = vmatpush2.bf16.msra.mxu0 0
    %261 = vmatprep.subr.bf16.mxu0 0
    %262 = vmatpush2.bf16.msra.mxu0 0
    %263 = vmatprep.subr.bf16.mxu0 0
    %264 = vmatpush2.bf16.msra.mxu0 0
    %265 = vmatprep.subr.bf16.mxu0 0
    %266 = vmatpush2.bf16.msra.mxu0 0
    %267 = vmatprep.mubr.bf16.mxu0 0
    %268 = vmatmul.mubr.bf16.gmra.mxu0 %v233
    %v269 = vpop.f32.mrf.mxu0
    %v270 = vadd.f32 %v225, %v269
    %v271 = vpop.f32.mrf.mxu0
    %v272 = vpop.f32.mrf.mxu0
    %v273 = vadd.f32 %v225, %v272
    %v274 = vpop.f32.mrf.mxu0
    %275 = vdwg.mxu0
    %278 = vrot.lane.b32.xlu0 %v162, 120
    %v279 = vpop.permute.xlu0 %278
    %280 = vrot.lane.b32.xlu0 %v165, 120
    %v281 = vpop.permute.xlu0 %280
    %284 = vrot.lane.b32.xlu0 %v162, 112
    %v285 = vpop.permute.xlu0 %284
    %286 = vrot.lane.b32.xlu0 %v165, 112
    %v287 = vpop.permute.xlu0 %286
    %290 = vrot.lane.b32.xlu0 %v162, 104
    %v291 = vpop.permute.xlu0 %290
    %292 = vrot.lane.b32.xlu0 %v165, 104
    %v293 = vpop.permute.xlu0 %292
    %v296 = vpack.c.bf16 %v162, %v162
    %v297 = vpack.c.bf16 %v165, %v165
    %v298 = vpack.c.bf16 %v279, %v279
    %v299 = vpack.c.bf16 %v281, %v281
    %v300 = vpack.c.bf16 %v285, %v285
    %v301 = vpack.c.bf16 %v287, %v287
    %v302 = vpack.c.bf16 %v291, %v291
    %v303 = vpack.c.bf16 %v293, %v293
    %306 = vrot.lane.b32.xlu0 %v216, 120
    %v307 = vpop.permute.xlu0 %306
    %308 = vrot.lane.b32.xlu0 %v219, 120
    %v309 = vpop.permute.xlu0 %308
    %312 = vrot.lane.b32.xlu0 %v216, 112
    %v313 = vpop.permute.xlu0 %312
    %314 = vrot.lane.b32.xlu0 %v219, 112
    %v315 = vpop.permute.xlu0 %314
    %318 = vrot.lane.b32.xlu0 %v216, 104
    %v319 = vpop.permute.xlu0 %318
    %320 = vrot.lane.b32.xlu0 %v219, 104
    %v321 = vpop.permute.xlu0 %320
    %v324 = vpack.c.bf16 %v216, %v216
    %v325 = vpack.c.bf16 %v219, %v219
    %v326 = vpack.c.bf16 %v307, %v307
    %v327 = vpack.c.bf16 %v309, %v309
    %v328 = vpack.c.bf16 %v313, %v313
    %v329 = vpack.c.bf16 %v315, %v315
    %v330 = vpack.c.bf16 %v319, %v319
    %v331 = vpack.c.bf16 %v321, %v321
    %334 = vrot.lane.b32.xlu0 %v270, 120
    %v335 = vpop.permute.xlu0 %334
    %336 = vrot.lane.b32.xlu0 %v273, 120
    %v337 = vpop.permute.xlu0 %336
    %340 = vrot.lane.b32.xlu0 %v270, 112
    %v341 = vpop.permute.xlu0 %340
    %342 = vrot.lane.b32.xlu0 %v273, 112
    %v343 = vpop.permute.xlu0 %342
    %346 = vrot.lane.b32.xlu0 %v270, 104
    %v347 = vpop.permute.xlu0 %346
    %348 = vrot.lane.b32.xlu0 %v273, 104
    %v349 = vpop.permute.xlu0 %348
    %v352 = vpack.c.bf16 %v270, %v270
    %v353 = vpack.c.bf16 %v273, %v273
    %v354 = vpack.c.bf16 %v335, %v335
    %v355 = vpack.c.bf16 %v337, %v337
    %v356 = vpack.c.bf16 %v341, %v341
    %v357 = vpack.c.bf16 %v343, %v343
    %v358 = vpack.c.bf16 %v347, %v347
    %v359 = vpack.c.bf16 %v349, %v349
    %v360 = vld [vmem:[#allocation8] sm:$0xff]
    %v361 = vld [vmem:[#allocation8 + $0x8] sm:$0xff]
    %vm362 = vcmp.eq.f32.partialorder %v360, 0.0
    %vm363 = vcmp.eq.f32.partialorder %v361, 0.0
    %v364 = vsel %vm362, -1e+09, 0.0
    %v365 = vsel %vm363, -1e+09, 0.0
    %vm366 = vcmask 64512
    %v368 = vsel %vm366, %v296, 0
    %v371 = vsel %vm366, %v324, 0
    %373 = vmatprep.subr.bf16.mxu0 0
    %374 = vmatpush1.bf16.xpose.msra.mxu0 0
    %375 = vmatprep.subr.bf16.mxu0 0
    %376 = vmatpush1.bf16.xpose.msra.mxu0 0
    %377 = vmatprep.subr.bf16.mxu0 0
    %378 = vmatpush1.bf16.xpose.msra.mxu0 0
    %379 = vmatprep.subr.bf16.mxu0 0
    %380 = vmatpush1.bf16.xpose.msra.mxu0 0
    %381 = vmatprep.subr.bf16.mxu0 0
    %382 = vmatpush1.bf16.xpose.msra.mxu0 0
    %383 = vmatprep.subr.bf16.mxu0 0
    %384 = vmatpush1.bf16.xpose.msra.mxu0 0
    %385 = vmatprep.subr.bf16.mxu0 0
    %386 = vmatpush1.bf16.xpose.msra.mxu0 0
    %387 = vmatprep.subr.bf16.mxu0 0
    %388 = vmatpush1.bf16.xpose.msra.mxu0 %v371
    %389 = vmatprep.subr.bf16.mxu0 0
    %390 = vmatpush2.bf16.xpose.msra.mxu0 0
    %391 = vmatprep.subr.bf16.mxu0 0
    %392 = vmatpush2.bf16.xpose.msra.mxu0 0
    %393 = vmatprep.subr.bf16.mxu0 0
    %394 = vmatpush2.bf16.xpose.msra.mxu0 0
    %395 = vmatprep.subr.bf16.mxu0 0
    %396 = vmatpush2.bf16.xpose.msra.mxu0 0
    %397 = vmatprep.subr.bf16.mxu0 0
    %398 = vmatpush2.bf16.xpose.msra.mxu0 0
    %399 = vmatprep.subr.bf16.mxu0 0
    %400 = vmatpush2.bf16.xpose.msra.mxu0 0
    %401 = vmatprep.subr.bf16.mxu0 0
    %402 = vmatpush2.bf16.xpose.msra.mxu0 0
    %403 = vmatprep.subr.bf16.mxu0 0
    %404 = vmatpush2.bf16.xpose.msra.mxu0 0
    %405 = vmatprep.mubr.bf16.mxu0 0
    %406 = vmatmul.mubr.bf16.gmra.mxu0 %v368
    %v407 = vpop.f32.mrf.mxu0
    %v408 = vadd.f32 %v364, %v407
    %v409 = vpop.f32.mrf.mxu0
    %v410 = vpop.f32.mrf.mxu0
    %v411 = vpop.f32.mrf.mxu0
    %412 = vdwg.mxu0
    %v414 = vsel %vm366, %v297, 0
    %v417 = vsel %vm366, %v325, 0
    %419 = vmatprep.subr.bf16.mxu0 0
    %420 = vmatpush1.bf16.xpose.msra.mxu0 0
    %421 = vmatprep.subr.bf16.mxu0 0
    %422 = vmatpush1.bf16.xpose.msra.mxu0 0
    %423 = vmatprep.subr.bf16.mxu0 0
    %424 = vmatpush1.bf16.xpose.msra.mxu0 0
    %425 = vmatprep.subr.bf16.mxu0 0
    %426 = vmatpush1.bf16.xpose.msra.mxu0 0
    %427 = vmatprep.subr.bf16.mxu0 0
    %428 = vmatpush1.bf16.xpose.msra.mxu0 0
    %429 = vmatprep.subr.bf16.mxu0 0
    %430 = vmatpush1.bf16.xpose.msra.mxu0 0
    %431 = vmatprep.subr.bf16.mxu0 0
    %432 = vmatpush1.bf16.xpose.msra.mxu0 0
    %433 = vmatprep.subr.bf16.mxu0 0
    %434 = vmatpush1.bf16.xpose.msra.mxu0 %v417
    %435 = vmatprep.subr.bf16.mxu0 0
    %436 = vmatpush2.bf16.xpose.msra.mxu0 0
    %437 = vmatprep.subr.bf16.mxu0 0
    %438 = vmatpush2.bf16.xpose.msra.mxu0 0
    %439 = vmatprep.subr.bf16.mxu0 0
    %440 = vmatpush2.bf16.xpose.msra.mxu0 0
    %441 = vmatprep.subr.bf16.mxu0 0
    %442 = vmatpush2.bf16.xpose.msra.mxu0 0
    %443 = vmatprep.subr.bf16.mxu0 0
    %444 = vmatpush2.bf16.xpose.msra.mxu0 0
    %445 = vmatprep.subr.bf16.mxu0 0
    %446 = vmatpush2.bf16.xpose.msra.mxu0 0
    %447 = vmatprep.subr.bf16.mxu0 0
    %448 = vmatpush2.bf16.xpose.msra.mxu0 0
    %449 = vmatprep.subr.bf16.mxu0 0
    %450 = vmatpush2.bf16.xpose.msra.mxu0 0
    %451 = vmatprep.mubr.bf16.mxu0 0
    %452 = vmatmul.mubr.bf16.gmra.mxu0 %v414
    %v453 = vpop.f32.mrf.mxu0
    %v454 = vadd.f32 %v365, %v453
    %v455 = vpop.f32.mrf.mxu0
    %v456 = vpop.f32.mrf.mxu0
    %v457 = vpop.f32.mrf.mxu0
    %458 = vdwg.mxu0
    %v460 = vsel %vm366, %v298, 0
    %v463 = vsel %vm366, %v326, 0
    %465 = vmatprep.subr.bf16.mxu0 0
    %466 = vmatpush1.bf16.xpose.msra.mxu0 0
    %467 = vmatprep.subr.bf16.mxu0 0
    %468 = vmatpush1.bf16.xpose.msra.mxu0 0
    %469 = vmatprep.subr.bf16.mxu0 0
    %470 = vmatpush1.bf16.xpose.msra.mxu0 0
    %471 = vmatprep.subr.bf16.mxu0 0
    %472 = vmatpush1.bf16.xpose.msra.mxu0 0
    %473 = vmatprep.subr.bf16.mxu0 0
    %474 = vmatpush1.bf16.xpose.msra.mxu0 0
    %475 = vmatprep.subr.bf16.mxu0 0
    %476 = vmatpush1.bf16.xpose.msra.mxu0 0
    %477 = vmatprep.subr.bf16.mxu0 0
    %478 = vmatpush1.bf16.xpose.msra.mxu0 0
    %479 = vmatprep.subr.bf16.mxu0 0
    %480 = vmatpush1.bf16.xpose.msra.mxu0 %v463
    %481 = vmatprep.subr.bf16.mxu0 0
    %482 = vmatpush2.bf16.xpose.msra.mxu0 0
    %483 = vmatprep.subr.bf16.mxu0 0
    %484 = vmatpush2.bf16.xpose.msra.mxu0 0
    %485 = vmatprep.subr.bf16.mxu0 0
    %486 = vmatpush2.bf16.xpose.msra.mxu0 0
    %487 = vmatprep.subr.bf16.mxu0 0
    %488 = vmatpush2.bf16.xpose.msra.mxu0 0
    %489 = vmatprep.subr.bf16.mxu0 0
    %490 = vmatpush2.bf16.xpose.msra.mxu0 0
    %491 = vmatprep.subr.bf16.mxu0 0
    %492 = vmatpush2.bf16.xpose.msra.mxu0 0
    %493 = vmatprep.subr.bf16.mxu0 0
    %494 = vmatpush2.bf16.xpose.msra.mxu0 0
    %495 = vmatprep.subr.bf16.mxu0 0
    %496 = vmatpush2.bf16.xpose.msra.mxu0 0
    %497 = vmatprep.mubr.bf16.mxu0 0
    %498 = vmatmul.mubr.bf16.gmra.mxu0 %v460
    %v499 = vpop.f32.mrf.mxu0
    %v500 = vadd.f32 %v364, %v499
    %v501 = vpop.f32.mrf.mxu0
    %v502 = vpop.f32.mrf.mxu0
    %v503 = vpop.f32.mrf.mxu0
    %504 = vdwg.mxu0
    %v506 = vsel %vm366, %v299, 0
    %v509 = vsel %vm366, %v327, 0
    %511 = vmatprep.subr.bf16.mxu0 0
    %512 = vmatpush1.bf16.xpose.msra.mxu0 0
    %513 = vmatprep.subr.bf16.mxu0 0
    %514 = vmatpush1.bf16.xpose.msra.mxu0 0
    %515 = vmatprep.subr.bf16.mxu0 0
    %516 = vmatpush1.bf16.xpose.msra.mxu0 0
    %517 = vmatprep.subr.bf16.mxu0 0
    %518 = vmatpush1.bf16.xpose.msra.mxu0 0
    %519 = vmatprep.subr.bf16.mxu0 0
    %520 = vmatpush1.bf16.xpose.msra.mxu0 0
    %521 = vmatprep.subr.bf16.mxu0 0
    %522 = vmatpush1.bf16.xpose.msra.mxu0 0
    %523 = vmatprep.subr.bf16.mxu0 0
    %524 = vmatpush1.bf16.xpose.msra.mxu0 0
    %525 = vmatprep.subr.bf16.mxu0 0
    %526 = vmatpush1.bf16.xpose.msra.mxu0 %v509
    %527 = vmatprep.subr.bf16.mxu0 0
    %528 = vmatpush2.bf16.xpose.msra.mxu0 0
    %529 = vmatprep.subr.bf16.mxu0 0
    %530 = vmatpush2.bf16.xpose.msra.mxu0 0
    %531 = vmatprep.subr.bf16.mxu0 0
    %532 = vmatpush2.bf16.xpose.msra.mxu0 0
    %533 = vmatprep.subr.bf16.mxu0 0
    %534 = vmatpush2.bf16.xpose.msra.mxu0 0
    %535 = vmatprep.subr.bf16.mxu0 0
    %536 = vmatpush2.bf16.xpose.msra.mxu0 0
    %537 = vmatprep.subr.bf16.mxu0 0
    %538 = vmatpush2.bf16.xpose.msra.mxu0 0
    %539 = vmatprep.subr.bf16.mxu0 0
    %540 = vmatpush2.bf16.xpose.msra.mxu0 0
    %541 = vmatprep.subr.bf16.mxu0 0
    %542 = vmatpush2.bf16.xpose.msra.mxu0 0
    %543 = vmatprep.mubr.bf16.mxu0 0
    %544 = vmatmul.mubr.bf16.gmra.mxu0 %v506
    %v545 = vpop.f32.mrf.mxu0
    %v546 = vadd.f32 %v365, %v545
    %v547 = vpop.f32.mrf.mxu0
    %v548 = vpop.f32.mrf.mxu0
    %v549 = vpop.f32.mrf.mxu0
    %550 = vdwg.mxu0
    %v552 = vsel %vm366, %v300, 0
    %v555 = vsel %vm366, %v328, 0
    %557 = vmatprep.subr.bf16.mxu0 0
    %558 = vmatpush1.bf16.xpose.msra.mxu0 0
    %559 = vmatprep.subr.bf16.mxu0 0
    %560 = vmatpush1.bf16.xpose.msra.mxu0 0
    %561 = vmatprep.subr.bf16.mxu0 0
    %562 = vmatpush1.bf16.xpose.msra.mxu0 0
    %563 = vmatprep.subr.bf16.mxu0 0
    %564 = vmatpush1.bf16.xpose.msra.mxu0 0
    %565 = vmatprep.subr.bf16.mxu0 0
    %566 = vmatpush1.bf16.xpose.msra.mxu0 0
    %567 = vmatprep.subr.bf16.mxu0 0
    %568 = vmatpush1.bf16.xpose.msra.mxu0 0
    %569 = vmatprep.subr.bf16.mxu0 0
    %570 = vmatpush1.bf16.xpose.msra.mxu0 0
    %571 = vmatprep.subr.bf16.mxu0 0
    %572 = vmatpush1.bf16.xpose.msra.mxu0 %v555
    %573 = vmatprep.subr.bf16.mxu0 0
    %574 = vmatpush2.bf16.xpose.msra.mxu0 0
    %575 = vmatprep.subr.bf16.mxu0 0
    %576 = vmatpush2.bf16.xpose.msra.mxu0 0
    %577 = vmatprep.subr.bf16.mxu0 0
    %578 = vmatpush2.bf16.xpose.msra.mxu0 0
    %579 = vmatprep.subr.bf16.mxu0 0
    %580 = vmatpush2.bf16.xpose.msra.mxu0 0
    %581 = vmatprep.subr.bf16.mxu0 0
    %582 = vmatpush2.bf16.xpose.msra.mxu0 0
    %583 = vmatprep.subr.bf16.mxu0 0
    %584 = vmatpush2.bf16.xpose.msra.mxu0 0
    %585 = vmatprep.subr.bf16.mxu0 0
    %586 = vmatpush2.bf16.xpose.msra.mxu0 0
    %587 = vmatprep.subr.bf16.mxu0 0
    %588 = vmatpush2.bf16.xpose.msra.mxu0 0
    %589 = vmatprep.mubr.bf16.mxu0 0
    %590 = vmatmul.mubr.bf16.gmra.mxu0 %v552
    %v591 = vpop.f32.mrf.mxu0
    %v592 = vadd.f32 %v364, %v591
    %v593 = vpop.f32.mrf.mxu0
    %v594 = vpop.f32.mrf.mxu0
    %v595 = vpop.f32.mrf.mxu0
    %596 = vdwg.mxu0
    %v598 = vsel %vm366, %v301, 0
    %v601 = vsel %vm366, %v329, 0
    %603 = vmatprep.subr.bf16.mxu0 0
    %604 = vmatpush1.bf16.xpose.msra.mxu0 0
    %605 = vmatprep.subr.bf16.mxu0 0
    %606 = vmatpush1.bf16.xpose.msra.mxu0 0
    %607 = vmatprep.subr.bf16.mxu0 0
    %608 = vmatpush1.bf16.xpose.msra.mxu0 0
    %609 = vmatprep.subr.bf16.mxu0 0
    %610 = vmatpush1.bf16.xpose.msra.mxu0 0
    %611 = vmatprep.subr.bf16.mxu0 0
    %612 = vmatpush1.bf16.xpose.msra.mxu0 0
    %613 = vmatprep.subr.bf16.mxu0 0
    %614 = vmatpush1.bf16.xpose.msra.mxu0 0
    %615 = vmatprep.subr.bf16.mxu0 0
    %616 = vmatpush1.bf16.xpose.msra.mxu0 0
    %617 = vmatprep.subr.bf16.mxu0 0
    %618 = vmatpush1.bf16.xpose.msra.mxu0 %v601
    %619 = vmatprep.subr.bf16.mxu0 0
    %620 = vmatpush2.bf16.xpose.msra.mxu0 0
    %621 = vmatprep.subr.bf16.mxu0 0
    %622 = vmatpush2.bf16.xpose.msra.mxu0 0
    %623 = vmatprep.subr.bf16.mxu0 0
    %624 = vmatpush2.bf16.xpose.msra.mxu0 0
    %625 = vmatprep.subr.bf16.mxu0 0
    %626 = vmatpush2.bf16.xpose.msra.mxu0 0
    %627 = vmatprep.subr.bf16.mxu0 0
    %628 = vmatpush2.bf16.xpose.msra.mxu0 0
    %629 = vmatprep.subr.bf16.mxu0 0
    %630 = vmatpush2.bf16.xpose.msra.mxu0 0
    %631 = vmatprep.subr.bf16.mxu0 0
    %632 = vmatpush2.bf16.xpose.msra.mxu0 0
    %633 = vmatprep.subr.bf16.mxu0 0
    %634 = vmatpush2.bf16.xpose.msra.mxu0 0
    %635 = vmatprep.mubr.bf16.mxu0 0
    %636 = vmatmul.mubr.bf16.gmra.mxu0 %v598
    %v637 = vpop.f32.mrf.mxu0
    %v638 = vadd.f32 %v365, %v637
    %v639 = vpop.f32.mrf.mxu0
    %v640 = vpop.f32.mrf.mxu0
    %v641 = vpop.f32.mrf.mxu0
    %642 = vdwg.mxu0
    %v644 = vsel %vm366, %v302, 0
    %v647 = vsel %vm366, %v330, 0
    %649 = vmatprep.subr.bf16.mxu0 0
    %650 = vmatpush1.bf16.xpose.msra.mxu0 0
    %651 = vmatprep.subr.bf16.mxu0 0
    %652 = vmatpush1.bf16.xpose.msra.mxu0 0
    %653 = vmatprep.subr.bf16.mxu0 0
    %654 = vmatpush1.bf16.xpose.msra.mxu0 0
    %655 = vmatprep.subr.bf16.mxu0 0
    %656 = vmatpush1.bf16.xpose.msra.mxu0 0
    %657 = vmatprep.subr.bf16.mxu0 0
    %658 = vmatpush1.bf16.xpose.msra.mxu0 0
    %659 = vmatprep.subr.bf16.mxu0 0
    %660 = vmatpush1.bf16.xpose.msra.mxu0 0
    %661 = vmatprep.subr.bf16.mxu0 0
    %662 = vmatpush1.bf16.xpose.msra.mxu0 0
    %663 = vmatprep.subr.bf16.mxu0 0
    %664 = vmatpush1.bf16.xpose.msra.mxu0 %v647
    %665 = vmatprep.subr.bf16.mxu0 0
    %666 = vmatpush2.bf16.xpose.msra.mxu0 0
    %667 = vmatprep.subr.bf16.mxu0 0
    %668 = vmatpush2.bf16.xpose.msra.mxu0 0
    %669 = vmatprep.subr.bf16.mxu0 0
    %670 = vmatpush2.bf16.xpose.msra.mxu0 0
    %671 = vmatprep.subr.bf16.mxu0 0
    %672 = vmatpush2.bf16.xpose.msra.mxu0 0
    %673 = vmatprep.subr.bf16.mxu0 0
    %674 = vmatpush2.bf16.xpose.msra.mxu0 0
    %675 = vmatprep.subr.bf16.mxu0 0
    %676 = vmatpush2.bf16.xpose.msra.mxu0 0
    %677 = vmatprep.subr.bf16.mxu0 0
    %678 = vmatpush2.bf16.xpose.msra.mxu0 0
    %679 = vmatprep.subr.bf16.mxu0 0
    %680 = vmatpush2.bf16.xpose.msra.mxu0 0
    %681 = vmatprep.mubr.bf16.mxu0 0
    %682 = vmatmul.mubr.bf16.gmra.mxu0 %v644
    %v683 = vpop.f32.mrf.mxu0
    %v684 = vadd.f32 %v364, %v683
    %v685 = vpop.f32.mrf.mxu0
    %v686 = vpop.f32.mrf.mxu0
    %v687 = vpop.f32.mrf.mxu0
    %688 = vdwg.mxu0
    %v690 = vsel %vm366, %v303, 0
    %v693 = vsel %vm366, %v331, 0
    %695 = vmatprep.subr.bf16.mxu0 0
    %696 = vmatpush1.bf16.xpose.msra.mxu0 0
    %697 = vmatprep.subr.bf16.mxu0 0
    %698 = vmatpush1.bf16.xpose.msra.mxu0 0
    %699 = vmatprep.subr.bf16.mxu0 0
    %700 = vmatpush1.bf16.xpose.msra.mxu0 0
    %701 = vmatprep.subr.bf16.mxu0 0
    %702 = vmatpush1.bf16.xpose.msra.mxu0 0
    %703 = vmatprep.subr.bf16.mxu0 0
    %704 = vmatpush1.bf16.xpose.msra.mxu0 0
    %705 = vmatprep.subr.bf16.mxu0 0
    %706 = vmatpush1.bf16.xpose.msra.mxu0 0
    %707 = vmatprep.subr.bf16.mxu0 0
    %708 = vmatpush1.bf16.xpose.msra.mxu0 0
    %709 = vmatprep.subr.bf16.mxu0 0
    %710 = vmatpush1.bf16.xpose.msra.mxu0 %v693
    %711 = vmatprep.subr.bf16.mxu0 0
    %712 = vmatpush2.bf16.xpose.msra.mxu0 0
    %713 = vmatprep.subr.bf16.mxu0 0
    %714 = vmatpush2.bf16.xpose.msra.mxu0 0
    %715 = vmatprep.subr.bf16.mxu0 0
    %716 = vmatpush2.bf16.xpose.msra.mxu0 0
    %717 = vmatprep.subr.bf16.mxu0 0
    %718 = vmatpush2.bf16.xpose.msra.mxu0 0
    %719 = vmatprep.subr.bf16.mxu0 0
    %720 = vmatpush2.bf16.xpose.msra.mxu0 0
    %721 = vmatprep.subr.bf16.mxu0 0
    %722 = vmatpush2.bf16.xpose.msra.mxu0 0
    %723 = vmatprep.subr.bf16.mxu0 0
    %724 = vmatpush2.bf16.xpose.msra.mxu0 0
    %725 = vmatprep.subr.bf16.mxu0 0
    %726 = vmatpush2.bf16.xpose.msra.mxu0 0
    %727 = vmatprep.mubr.bf16.mxu0 0
    %728 = vmatmul.mubr.bf16.gmra.mxu0 %v690
    %v729 = vpop.f32.mrf.mxu0
    %v730 = vadd.f32 %v365, %v729
    %v731 = vpop.f32.mrf.mxu0
    %v732 = vpop.f32.mrf.mxu0
    %v733 = vpop.f32.mrf.mxu0
    %734 = vdwg.mxu0
    %v735 = vsel %vm366, %v408, -inf
    %736 = vmax.xlane.f32.xlu0 %v735
    %v737 = vpop.xlane.xlu0 %736
    %v738 = vsel %vm366, %v454, -inf
    %739 = vmax.xlane.f32.xlu0 %v738
    %v740 = vpop.xlane.xlu0 %739
    %v741 = vsel %vm366, %v500, -inf
    %742 = vmax.xlane.f32.xlu0 %v741
    %v743 = vpop.xlane.xlu0 %742
    %v744 = vsel %vm366, %v546, -inf
    %745 = vmax.xlane.f32.xlu0 %v744
    %v746 = vpop.xlane.xlu0 %745
    %v747 = vsel %vm366, %v592, -inf
    %748 = vmax.xlane.f32.xlu0 %v747
    %v749 = vpop.xlane.xlu0 %748
    %v750 = vsel %vm366, %v638, -inf
    %751 = vmax.xlane.f32.xlu0 %v750
    %v752 = vpop.xlane.xlu0 %751
    %v753 = vsel %vm366, %v684, -inf
    %754 = vmax.xlane.f32.xlu0 %v753
    %v755 = vpop.xlane.xlu0 %754
    %v756 = vsel %vm366, %v730, -inf
    %757 = vmax.xlane.f32.xlu0 %v756
    %v758 = vpop.xlane.xlu0 %757
    %v759 = vsub.f32 %v408, %v737
    %v760 = vsub.f32 %v454, %v740
    %v761 = vsub.f32 %v500, %v743
    %v762 = vsub.f32 %v546, %v746
    %v763 = vsub.f32 %v592, %v749
    %v764 = vsub.f32 %v638, %v752
    %v765 = vsub.f32 %v684, %v755
    %v766 = vsub.f32 %v730, %v758
    %v767 = vmul.f32 %v759, 1.442695
    %v768 = vpow.pop %v767
    %v769 = vmul.f32 %v760, 1.442695
    %v770 = vpow.pop %v769
    %v771 = vmul.f32 %v761, 1.442695
    %v772 = vpow.pop %v771
    %v773 = vmul.f32 %v762, 1.442695
    %v774 = vpow.pop %v773
    %v775 = vmul.f32 %v763, 1.442695
    %v776 = vpow.pop %v775
    %v777 = vmul.f32 %v764, 1.442695
    %v778 = vpow.pop %v777
    %v779 = vmul.f32 %v765, 1.442695
    %v780 = vpow.pop %v779
    %v781 = vmul.f32 %v766, 1.442695
    %v782 = vpow.pop %v781
    %v783 = vsel %vm366, %v768, 0.0
    %784 = vadd.xlane.f32.xlu0 %v783
    %v785 = vpop.xlane.xlu0 %784
    %v786 = vsel %vm366, %v770, 0.0
    %787 = vadd.xlane.f32.xlu0 %v786
    %v788 = vpop.xlane.xlu0 %787
    %v789 = vsel %vm366, %v772, 0.0
    %790 = vadd.xlane.f32.xlu0 %v789
    %v791 = vpop.xlane.xlu0 %790
    %v792 = vsel %vm366, %v774, 0.0
    %793 = vadd.xlane.f32.xlu0 %v792
    %v794 = vpop.xlane.xlu0 %793
    %v795 = vsel %vm366, %v776, 0.0
    %796 = vadd.xlane.f32.xlu0 %v795
    %v797 = vpop.xlane.xlu0 %796
    %v798 = vsel %vm366, %v778, 0.0
    %799 = vadd.xlane.f32.xlu0 %v798
    %v800 = vpop.xlane.xlu0 %799
    %v801 = vsel %vm366, %v780, 0.0
    %802 = vadd.xlane.f32.xlu0 %v801
    %v803 = vpop.xlane.xlu0 %802
    %v804 = vsel %vm366, %v782, 0.0
    %805 = vadd.xlane.f32.xlu0 %v804
    %v806 = vpop.xlane.xlu0 %805
    %v807 = vrcp.pop %v785
    %v808 = vrcp.pop %v788
    %v809 = vrcp.pop %v791
    %v810 = vrcp.pop %v794
    %v811 = vrcp.pop %v797
    %v812 = vrcp.pop %v800
    %v813 = vrcp.pop %v803
    %v814 = vrcp.pop %v806
    %v815 = vmul.f32 %v768, %v807
    %v816 = vmul.f32 %v770, %v808
    %v817 = vmul.f32 %v772, %v809
    %v818 = vmul.f32 %v774, %v810
    %v819 = vmul.f32 %v776, %v811
    %v820 = vmul.f32 %v778, %v812
    %v821 = vmul.f32 %v780, %v813
    %v822 = vmul.f32 %v782, %v814
    %v823 = vpack.c.bf16 %v815, %v815
    %v824 = vpack.c.bf16 %v816, %v816
    %v825 = vpack.c.bf16 %v817, %v817
    %v826 = vpack.c.bf16 %v818, %v818
    %v827 = vpack.c.bf16 %v819, %v819
    %v828 = vpack.c.bf16 %v820, %v820
    %v829 = vpack.c.bf16 %v821, %v821
    %v830 = vpack.c.bf16 %v822, %v822
    %v832 = vsel %vm366, %v823, 0
    %vm834 = vcmask 1043456
    %v836 = vsel %vm834, %v352, 0
    %838 = vmatprep.subr.bf16.mxu0 0
    %839 = vmatpush1.bf16.msra.mxu0 0
    %840 = vmatprep.subr.bf16.mxu0 0
    %841 = vmatpush1.bf16.msra.mxu0 0
    %842 = vmatprep.subr.bf16.mxu0 0
    %843 = vmatpush1.bf16.msra.mxu0 0
    %844 = vmatprep.subr.bf16.mxu0 0
    %845 = vmatpush1.bf16.msra.mxu0 0
    %846 = vmatprep.subr.bf16.mxu0 0
    %847 = vmatpush1.bf16.msra.mxu0 0
    %848 = vmatprep.subr.bf16.mxu0 0
    %849 = vmatpush1.bf16.msra.mxu0 0
    %850 = vmatprep.subr.bf16.mxu0 0
    %851 = vmatpush1.bf16.msra.mxu0 0
    %852 = vmatprep.subr.bf16.mxu0 0
    %853 = vmatpush1.bf16.msra.mxu0 %v836
    %854 = vmatprep.subr.bf16.mxu0 0
    %855 = vmatpush2.bf16.msra.mxu0 0
    %856 = vmatprep.subr.bf16.mxu0 0
    %857 = vmatpush2.bf16.msra.mxu0 0
    %858 = vmatprep.subr.bf16.mxu0 0
    %859 = vmatpush2.bf16.msra.mxu0 0
    %860 = vmatprep.subr.bf16.mxu0 0
    %861 = vmatpush2.bf16.msra.mxu0 0
    %862 = vmatprep.subr.bf16.mxu0 0
    %863 = vmatpush2.bf16.msra.mxu0 0
    %864 = vmatprep.subr.bf16.mxu0 0
    %865 = vmatpush2.bf16.msra.mxu0 0
    %866 = vmatprep.subr.bf16.mxu0 0
    %867 = vmatpush2.bf16.msra.mxu0 0
    %868 = vmatprep.subr.bf16.mxu0 0
    %869 = vmatpush2.bf16.msra.mxu0 0
    %870 = vmatprep.mubr.bf16.mxu0 0
    %871 = vmatmul.mubr.bf16.gmra.mxu0 %v832
    %v872 = vpop.f32.mrf.mxu0
    %v873 = vadd.f32 0.0, %v872
    %v874 = vpop.f32.mrf.mxu0
    %v875 = vpop.f32.mrf.mxu0
    %v876 = vpop.f32.mrf.mxu0
    %877 = vdwg.mxu0
    %v879 = vsel %vm366, %v824, 0
    %v882 = vsel %vm834, %v353, 0
    %884 = vmatprep.subr.bf16.mxu0 0
    %885 = vmatpush1.bf16.msra.mxu0 0
    %886 = vmatprep.subr.bf16.mxu0 0
    %887 = vmatpush1.bf16.msra.mxu0 0
    %888 = vmatprep.subr.bf16.mxu0 0
    %889 = vmatpush1.bf16.msra.mxu0 0
    %890 = vmatprep.subr.bf16.mxu0 0
    %891 = vmatpush1.bf16.msra.mxu0 0
    %892 = vmatprep.subr.bf16.mxu0 0
    %893 = vmatpush1.bf16.msra.mxu0 0
    %894 = vmatprep.subr.bf16.mxu0 0
    %895 = vmatpush1.bf16.msra.mxu0 0
    %896 = vmatprep.subr.bf16.mxu0 0
    %897 = vmatpush1.bf16.msra.mxu0 0
    %898 = vmatprep.subr.bf16.mxu0 0
    %899 = vmatpush1.bf16.msra.mxu0 %v882
    %900 = vmatprep.subr.bf16.mxu0 0
    %901 = vmatpush2.bf16.msra.mxu0 0
    %902 = vmatprep.subr.bf16.mxu0 0
    %903 = vmatpush2.bf16.msra.mxu0 0
    %904 = vmatprep.subr.bf16.mxu0 0
    %905 = vmatpush2.bf16.msra.mxu0 0
    %906 = vmatprep.subr.bf16.mxu0 0
    %907 = vmatpush2.bf16.msra.mxu0 0
    %908 = vmatprep.subr.bf16.mxu0 0
    %909 = vmatpush2.bf16.msra.mxu0 0
    %910 = vmatprep.subr.bf16.mxu0 0
    %911 = vmatpush2.bf16.msra.mxu0 0
    %912 = vmatprep.subr.bf16.mxu0 0
    %913 = vmatpush2.bf16.msra.mxu0 0
    %914 = vmatprep.subr.bf16.mxu0 0
    %915 = vmatpush2.bf16.msra.mxu0 0
    %916 = vmatprep.mubr.bf16.mxu0 0
    %917 = vmatmul.mubr.bf16.gmra.mxu0 %v879
    %v918 = vpop.f32.mrf.mxu0
    %v919 = vadd.f32 0.0, %v918
    %v920 = vpop.f32.mrf.mxu0
    %v921 = vpop.f32.mrf.mxu0
    %v922 = vpop.f32.mrf.mxu0
    %923 = vdwg.mxu0
    %v925 = vsel %vm366, %v825, 0
    %v928 = vsel %vm834, %v354, 0
    %930 = vmatprep.subr.bf16.mxu0 0
    %931 = vmatpush1.bf16.msra.mxu0 0
    %932 = vmatprep.subr.bf16.mxu0 0
    %933 = vmatpush1.bf16.msra.mxu0 0
    %934 = vmatprep.subr.bf16.mxu0 0
    %935 = vmatpush1.bf16.msra.mxu0 0
    %936 = vmatprep.subr.bf16.mxu0 0
    %937 = vmatpush1.bf16.msra.mxu0 0
    %938 = vmatprep.subr.bf16.mxu0 0
    %939 = vmatpush1.bf16.msra.mxu0 0
    %940 = vmatprep.subr.bf16.mxu0 0
    %941 = vmatpush1.bf16.msra.mxu0 0
    %942 = vmatprep.subr.bf16.mxu0 0
    %943 = vmatpush1.bf16.msra.mxu0 0
    %944 = vmatprep.subr.bf16.mxu0 0
    %945 = vmatpush1.bf16.msra.mxu0 %v928
    %946 = vmatprep.subr.bf16.mxu0 0
    %947 = vmatpush2.bf16.msra.mxu0 0
    %948 = vmatprep.subr.bf16.mxu0 0
    %949 = vmatpush2.bf16.msra.mxu0 0
    %950 = vmatprep.subr.bf16.mxu0 0
    %951 = vmatpush2.bf16.msra.mxu0 0
    %952 = vmatprep.subr.bf16.mxu0 0
    %953 = vmatpush2.bf16.msra.mxu0 0
    %954 = vmatprep.subr.bf16.mxu0 0
    %955 = vmatpush2.bf16.msra.mxu0 0
    %956 = vmatprep.subr.bf16.mxu0 0
    %957 = vmatpush2.bf16.msra.mxu0 0
    %958 = vmatprep.subr.bf16.mxu0 0
    %959 = vmatpush2.bf16.msra.mxu0 0
    %960 = vmatprep.subr.bf16.mxu0 0
    %961 = vmatpush2.bf16.msra.mxu0 0
    %962 = vmatprep.mubr.bf16.mxu0 0
    %963 = vmatmul.mubr.bf16.gmra.mxu0 %v925
    %v964 = vpop.f32.mrf.mxu0
    %v965 = vadd.f32 0.0, %v964
    %v966 = vpop.f32.mrf.mxu0
    %v967 = vpop.f32.mrf.mxu0
    %v968 = vpop.f32.mrf.mxu0
    %969 = vdwg.mxu0
    %v971 = vsel %vm366, %v826, 0
    %v974 = vsel %vm834, %v355, 0
    %976 = vmatprep.subr.bf16.mxu0 0
    %977 = vmatpush1.bf16.msra.mxu0 0
    %978 = vmatprep.subr.bf16.mxu0 0
    %979 = vmatpush1.bf16.msra.mxu0 0
    %980 = vmatprep.subr.bf16.mxu0 0
    %981 = vmatpush1.bf16.msra.mxu0 0
    %982 = vmatprep.subr.bf16.mxu0 0
    %983 = vmatpush1.bf16.msra.mxu0 0
    %984 = vmatprep.subr.bf16.mxu0 0
    %985 = vmatpush1.bf16.msra.mxu0 0
    %986 = vmatprep.subr.bf16.mxu0 0
    %987 = vmatpush1.bf16.msra.mxu0 0
    %988 = vmatprep.subr.bf16.mxu0 0
    %989 = vmatpush1.bf16.msra.mxu0 0
    %990 = vmatprep.subr.bf16.mxu0 0
    %991 = vmatpush1.bf16.msra.mxu0 %v974
    %992 = vmatprep.subr.bf16.mxu0 0
    %993 = vmatpush2.bf16.msra.mxu0 0
    %994 = vmatprep.subr.bf16.mxu0 0
    %995 = vmatpush2.bf16.msra.mxu0 0
    %996 = vmatprep.subr.bf16.mxu0 0
    %997 = vmatpush2.bf16.msra.mxu0 0
    %998 = vmatprep.subr.bf16.mxu0 0
    %999 = vmatpush2.bf16.msra.mxu0 0
    %1000 = vmatprep.subr.bf16.mxu0 0
    %1001 = vmatpush2.bf16.msra.mxu0 0
    %1002 = vmatprep.subr.bf16.mxu0 0
    %1003 = vmatpush2.bf16.msra.mxu0 0
    %1004 = vmatprep.subr.bf16.mxu0 0
    %1005 = vmatpush2.bf16.msra.mxu0 0
    %1006 = vmatprep.subr.bf16.mxu0 0
    %1007 = vmatpush2.bf16.msra.mxu0 0
    %1008 = vmatprep.mubr.bf16.mxu0 0
    %1009 = vmatmul.mubr.bf16.gmra.mxu0 %v971
    %v1010 = vpop.f32.mrf.mxu0
    %v1011 = vadd.f32 0.0, %v1010
    %v1012 = vpop.f32.mrf.mxu0
    %v1013 = vpop.f32.mrf.mxu0
    %v1014 = vpop.f32.mrf.mxu0
    %1015 = vdwg.mxu0
    %v1017 = vsel %vm366, %v827, 0
    %v1020 = vsel %vm834, %v356, 0
    %1022 = vmatprep.subr.bf16.mxu0 0
    %1023 = vmatpush1.bf16.msra.mxu0 0
    %1024 = vmatprep.subr.bf16.mxu0 0
    %1025 = vmatpush1.bf16.msra.mxu0 0
    %1026 = vmatprep.subr.bf16.mxu0 0
    %1027 = vmatpush1.bf16.msra.mxu0 0
    %1028 = vmatprep.subr.bf16.mxu0 0
    %1029 = vmatpush1.bf16.msra.mxu0 0
    %1030 = vmatprep.subr.bf16.mxu0 0
    %1031 = vmatpush1.bf16.msra.mxu0 0
    %1032 = vmatprep.subr.bf16.mxu0 0
    %1033 = vmatpush1.bf16.msra.mxu0 0
    %1034 = vmatprep.subr.bf16.mxu0 0
    %1035 = vmatpush1.bf16.msra.mxu0 0
    %1036 = vmatprep.subr.bf16.mxu0 0
    %1037 = vmatpush1.bf16.msra.mxu0 %v1020
    %1038 = vmatprep.subr.bf16.mxu0 0
    %1039 = vmatpush2.bf16.msra.mxu0 0
    %1040 = vmatprep.subr.bf16.mxu0 0
    %1041 = vmatpush2.bf16.msra.mxu0 0
    %1042 = vmatprep.subr.bf16.mxu0 0
    %1043 = vmatpush2.bf16.msra.mxu0 0
    %1044 = vmatprep.subr.bf16.mxu0 0
    %1045 = vmatpush2.bf16.msra.mxu0 0
    %1046 = vmatprep.subr.bf16.mxu0 0
    %1047 = vmatpush2.bf16.msra.mxu0 0
    %1048 = vmatprep.subr.bf16.mxu0 0
    %1049 = vmatpush2.bf16.msra.mxu0 0
    %1050 = vmatprep.subr.bf16.mxu0 0
    %1051 = vmatpush2.bf16.msra.mxu0 0
    %1052 = vmatprep.subr.bf16.mxu0 0
    %1053 = vmatpush2.bf16.msra.mxu0 0
    %1054 = vmatprep.mubr.bf16.mxu0 0
    %1055 = vmatmul.mubr.bf16.gmra.mxu0 %v1017
    %v1056 = vpop.f32.mrf.mxu0
    %v1057 = vadd.f32 0.0, %v1056
    %v1058 = vpop.f32.mrf.mxu0
    %v1059 = vpop.f32.mrf.mxu0
    %v1060 = vpop.f32.mrf.mxu0
    %1061 = vdwg.mxu0
    %v1063 = vsel %vm366, %v828, 0
    %v1066 = vsel %vm834, %v357, 0
    %1068 = vmatprep.subr.bf16.mxu0 0
    %1069 = vmatpush1.bf16.msra.mxu0 0
    %1070 = vmatprep.subr.bf16.mxu0 0
    %1071 = vmatpush1.bf16.msra.mxu0 0
    %1072 = vmatprep.subr.bf16.mxu0 0
    %1073 = vmatpush1.bf16.msra.mxu0 0
    %1074 = vmatprep.subr.bf16.mxu0 0
    %1075 = vmatpush1.bf16.msra.mxu0 0
    %1076 = vmatprep.subr.bf16.mxu0 0
    %1077 = vmatpush1.bf16.msra.mxu0 0
    %1078 = vmatprep.subr.bf16.mxu0 0
    %1079 = vmatpush1.bf16.msra.mxu0 0
    %1080 = vmatprep.subr.bf16.mxu0 0
    %1081 = vmatpush1.bf16.msra.mxu0 0
    %1082 = vmatprep.subr.bf16.mxu0 0
    %1083 = vmatpush1.bf16.msra.mxu0 %v1066
    %1084 = vmatprep.subr.bf16.mxu0 0
    %1085 = vmatpush2.bf16.msra.mxu0 0
    %1086 = vmatprep.subr.bf16.mxu0 0
    %1087 = vmatpush2.bf16.msra.mxu0 0
    %1088 = vmatprep.subr.bf16.mxu0 0
    %1089 = vmatpush2.bf16.msra.mxu0 0
    %1090 = vmatprep.subr.bf16.mxu0 0
    %1091 = vmatpush2.bf16.msra.mxu0 0
    %1092 = vmatprep.subr.bf16.mxu0 0
    %1093 = vmatpush2.bf16.msra.mxu0 0
    %1094 = vmatprep.subr.bf16.mxu0 0
    %1095 = vmatpush2.bf16.msra.mxu0 0
    %1096 = vmatprep.subr.bf16.mxu0 0
    %1097 = vmatpush2.bf16.msra.mxu0 0
    %1098 = vmatprep.subr.bf16.mxu0 0
    %1099 = vmatpush2.bf16.msra.mxu0 0
    %1100 = vmatprep.mubr.bf16.mxu0 0
    %1101 = vmatmul.mubr.bf16.gmra.mxu0 %v1063
    %v1102 = vpop.f32.mrf.mxu0
    %v1103 = vadd.f32 0.0, %v1102
    %v1104 = vpop.f32.mrf.mxu0
    %v1105 = vpop.f32.mrf.mxu0
    %v1106 = vpop.f32.mrf.mxu0
    %1107 = vdwg.mxu0
    %v1109 = vsel %vm366, %v829, 0
    %v1112 = vsel %vm834, %v358, 0
    %1114 = vmatprep.subr.bf16.mxu0 0
    %1115 = vmatpush1.bf16.msra.mxu0 0
    %1116 = vmatprep.subr.bf16.mxu0 0
    %1117 = vmatpush1.bf16.msra.mxu0 0
    %1118 = vmatprep.subr.bf16.mxu0 0
    %1119 = vmatpush1.bf16.msra.mxu0 0
    %1120 = vmatprep.subr.bf16.mxu0 0
    %1121 = vmatpush1.bf16.msra.mxu0 0
    %1122 = vmatprep.subr.bf16.mxu0 0
    %1123 = vmatpush1.bf16.msra.mxu0 0
    %1124 = vmatprep.subr.bf16.mxu0 0
    %1125 = vmatpush1.bf16.msra.mxu0 0
    %1126 = vmatprep.subr.bf16.mxu0 0
    %1127 = vmatpush1.bf16.msra.mxu0 0
    %1128 = vmatprep.subr.bf16.mxu0 0
    %1129 = vmatpush1.bf16.msra.mxu0 %v1112
    %1130 = vmatprep.subr.bf16.mxu0 0
    %1131 = vmatpush2.bf16.msra.mxu0 0
    %1132 = vmatprep.subr.bf16.mxu0 0
    %1133 = vmatpush2.bf16.msra.mxu0 0
    %1134 = vmatprep.subr.bf16.mxu0 0
    %1135 = vmatpush2.bf16.msra.mxu0 0
    %1136 = vmatprep.subr.bf16.mxu0 0
    %1137 = vmatpush2.bf16.msra.mxu0 0
    %1138 = vmatprep.subr.bf16.mxu0 0
    %1139 = vmatpush2.bf16.msra.mxu0 0
    %1140 = vmatprep.subr.bf16.mxu0 0
    %1141 = vmatpush2.bf16.msra.mxu0 0
    %1142 = vmatprep.subr.bf16.mxu0 0
    %1143 = vmatpush2.bf16.msra.mxu0 0
    %1144 = vmatprep.subr.bf16.mxu0 0
    %1145 = vmatpush2.bf16.msra.mxu0 0
    %1146 = vmatprep.mubr.bf16.mxu0 0
    %1147 = vmatmul.mubr.bf16.gmra.mxu0 %v1109
    %v1148 = vpop.f32.mrf.mxu0
    %v1149 = vadd.f32 0.0, %v1148
    %v1150 = vpop.f32.mrf.mxu0
    %v1151 = vpop.f32.mrf.mxu0
    %v1152 = vpop.f32.mrf.mxu0
    %1153 = vdwg.mxu0
    %v1155 = vsel %vm366, %v830, 0
    %v1158 = vsel %vm834, %v359, 0
    %1160 = vmatprep.subr.bf16.mxu0 0
    %1161 = vmatpush1.bf16.msra.mxu0 0
    %1162 = vmatprep.subr.bf16.mxu0 0
    %1163 = vmatpush1.bf16.msra.mxu0 0
    %1164 = vmatprep.subr.bf16.mxu0 0
    %1165 = vmatpush1.bf16.msra.mxu0 0
    %1166 = vmatprep.subr.bf16.mxu0 0
    %1167 = vmatpush1.bf16.msra.mxu0 0
    %1168 = vmatprep.subr.bf16.mxu0 0
    %1169 = vmatpush1.bf16.msra.mxu0 0
    %1170 = vmatprep.subr.bf16.mxu0 0
    %1171 = vmatpush1.bf16.msra.mxu0 0
    %1172 = vmatprep.subr.bf16.mxu0 0
    %1173 = vmatpush1.bf16.msra.mxu0 0
    %1174 = vmatprep.subr.bf16.mxu0 0
    %1175 = vmatpush1.bf16.msra.mxu0 %v1158
    %1176 = vmatprep.subr.bf16.mxu0 0
    %1177 = vmatpush2.bf16.msra.mxu0 0
    %1178 = vmatprep.subr.bf16.mxu0 0
    %1179 = vmatpush2.bf16.msra.mxu0 0
    %1180 = vmatprep.subr.bf16.mxu0 0
    %1181 = vmatpush2.bf16.msra.mxu0 0
    %1182 = vmatprep.subr.bf16.mxu0 0
    %1183 = vmatpush2.bf16.msra.mxu0 0
    %1184 = vmatprep.subr.bf16.mxu0 0
    %1185 = vmatpush2.bf16.msra.mxu0 0
    %1186 = vmatprep.subr.bf16.mxu0 0
    %1187 = vmatpush2.bf16.msra.mxu0 0
    %1188 = vmatprep.subr.bf16.mxu0 0
    %1189 = vmatpush2.bf16.msra.mxu0 0
    %1190 = vmatprep.subr.bf16.mxu0 0
    %1191 = vmatpush2.bf16.msra.mxu0 0
    %1192 = vmatprep.mubr.bf16.mxu0 0
    %1193 = vmatmul.mubr.bf16.gmra.mxu0 %v1155
    %v1194 = vpop.f32.mrf.mxu0
    %v1195 = vadd.f32 0.0, %v1194
    %v1196 = vpop.f32.mrf.mxu0
    %v1197 = vpop.f32.mrf.mxu0
    %v1198 = vpop.f32.mrf.mxu0
    %1199 = vdwg.mxu0
    %1202 = vrot.lane.b32.xlu0 %v965, 8
    %v1203 = vpop.permute.xlu0 %1202
    %1204 = vrot.lane.b32.xlu0 %v1011, 8
    %v1205 = vpop.permute.xlu0 %1204
    %1210 = vrot.lane.b32.xlu0 %v1057, 16
    %v1211 = vpop.permute.xlu0 %1210
    %1212 = vrot.lane.b32.xlu0 %v1103, 16
    %v1213 = vpop.permute.xlu0 %1212
    %1218 = vrot.lane.b32.xlu0 %v1149, 24
    %v1219 = vpop.permute.xlu0 %1218
    %1220 = vrot.lane.b32.xlu0 %v1195, 24
    %v1221 = vpop.permute.xlu0 %1220
    %v1224 = vsel %vm366, %v873, %v1203
    %v1225 = vsel %vm366, %v919, %v1205
    %vm1226 = vcmask 130048
    %v1227 = vsel %vm1226, %v1224, %v1211
    %v1228 = vsel %vm1226, %v1225, %v1213
    %vm1229 = vcmask 195584
    %v1230 = vsel %vm1229, %v1227, %v1219
    %v1231 = vsel %vm1229, %v1228, %v1221
    %v1232 = vpack.c.bf16 %v1231, %v1230
    %v1233 = vlaneseq
    %v1234 = vshrl.u32 %v1233, 7
    %v1235 = vsub.s32 3, %v1234
    %v1236 = vrot.slane %v106, %v1235
    %1237 = vrot.lane.b32.xlu0 %v119, 32
    %v1238 = vpop.permute.xlu0 %1237
    %1239 = vrot.lane.b32.xlu0 %v120, 32
    %v1240 = vpop.permute.xlu0 %1239
    %v1244 = vsel %vm123, %v1232, 0
    %1246 = vmatprep.subr.bf16.mxu0 0
    %1247 = vmatpush1.bf16.msra.mxu0 0
    %1248 = vmatprep.subr.bf16.mxu0 0
    %1249 = vmatpush1.bf16.msra.mxu0 0
    %1250 = vmatprep.subr.bf16.mxu0 0
    %1251 = vmatpush1.bf16.msra.mxu0 0
    %1252 = vmatprep.subr.bf16.mxu0 0
    %1253 = vmatpush1.bf16.msra.mxu0 0
    %1254 = vmatprep.subr.bf16.mxu0 0
    %1255 = vmatpush1.bf16.msra.mxu0 0
    %1256 = vmatprep.subr.bf16.mxu0 0
    %1257 = vmatpush1.bf16.msra.mxu0 0
    %1258 = vmatprep.subr.bf16.mxu0 0
    %1259 = vmatpush1.bf16.msra.mxu0 %v1240
    %1260 = vmatprep.subr.bf16.mxu0 0
    %1261 = vmatpush1.bf16.msra.mxu0 %v1238
    %1262 = vmatprep.subr.bf16.mxu0 0
    %1263 = vmatpush2.bf16.msra.mxu0 0
    %1264 = vmatprep.subr.bf16.mxu0 0
    %1265 = vmatpush2.bf16.msra.mxu0 0
    %1266 = vmatprep.subr.bf16.mxu0 0
    %1267 = vmatpush2.bf16.msra.mxu0 0
    %1268 = vmatprep.subr.bf16.mxu0 0
    %1269 = vmatpush2.bf16.msra.mxu0 0
    %1270 = vmatprep.subr.bf16.mxu0 0
    %1271 = vmatpush2.bf16.msra.mxu0 0
    %1272 = vmatprep.subr.bf16.mxu0 0
    %1273 = vmatpush2.bf16.msra.mxu0 0
    %1274 = vmatprep.subr.bf16.mxu0 0
    %1275 = vmatpush2.bf16.msra.mxu0 0
    %1276 = vmatprep.subr.bf16.mxu0 0
    %1277 = vmatpush2.bf16.msra.mxu0 0
    %1278 = vmatprep.mubr.bf16.mxu0 0
    %1279 = vmatmul.mubr.bf16.gmra.mxu0 %v1244
    %v1280 = vpop.f32.mrf.mxu0
    %v1281 = vadd.f32 %v1236, %v1280
    %v1282 = vpop.f32.mrf.mxu0
    %v1283 = vpop.f32.mrf.mxu0
    %v1284 = vadd.f32 %v1236, %v1283
    %v1285 = vpop.f32.mrf.mxu0
    %1286 = vdwg.mxu0
    %1287 = vst.msk [vmem:[#allocation11] sm:$0xff] %vm123, %v1281
    %1288 = vst.msk [vmem:[#allocation11 + $0x8] sm:$0xff] %vm123, %v1284
    // Predicated region
    $region46: #{tpu_custom_call.1} parent=1 // pred_check
      _
    $region47: #{tpu_custom_call.1} parent=1 // pred_check_branch
      %1290 = sbr.rel (0) target = $region49
    $region48: #{tpu_custom_call.1} parent=1 // pred_region
      %s1292 = ssub.s32 256, 256
      %1293 = vsyncadd [#allocation4], %s1292
      %s1294 = sshll.u32 [#allocation11], 4
      %s1295 = int_to_ptr.vmem [resolvable:$true] %s1294
      %1300 = dma.vmem_to_hbm [thread:$0]  %s1295, 256, %s6, [#allocation4], 128, 128, 8
    $region49: #{tpu_custom_call.1} parent=1 // pred_fallthru
      _
    // Predicated region
    $region50: #{tpu_custom_call.1} parent=1 // pred_check
      _
    $region51: #{tpu_custom_call.1} parent=1 // pred_check_branch
      %1302 = sbr.rel (0) target = $region53
    $region52: #{tpu_custom_call.1} parent=1 // pred_region
      %1303 = dma.done [#allocation4], 256
    $region53: #{tpu_custom_call.1} parent=1 // pred_fallthru
      _
    %1304 = vsyncpa [#allocation3], 1
    %1305 = vsyncpa [#allocation6], 1
    %1306 = vsyncpa [#allocation9], 1
    %1307 = vsyncpa [#allocation4], 1

</llo_original>
